<compile_context>
chip_gen: v6e
topology: v6e:2x2x1
jax: 0.10.0
libtpu: 0.0.40
codegen_flags: <defaults>
</compile_context>

<pallas_src>
import jax
import jax.numpy as jnp
from jax.experimental import pallas as pl
from jax.experimental.pallas import tpu as pltpu


# ------------------------------ tuning knobs ------------------------------- #

_PALLAS_MIN_BYTES = 1 << 20      # below this, skip Pallas: XLA copy / fusion wins
_CHUNK_TARGET_BYTES = 2 << 20    # keep each DMA chunk >= ~2 MiB


def _target_num_chunks(nbytes: int) -> int:
    """Number of concurrently outstanding DMA descriptors, per TPU generation."""
    try:
        kind = jax.devices()[0].device_kind.lower()
    except Exception:  # pragma: no cover - defensive; heuristics only
        kind = ""
    if "v5" in kind:
        # ~0.8 TB/s HBM: one descriptor saturates unless the tensor is huge.
        k = 1 if nbytes <= (64 << 20) else 4
    elif "v6" in kind:
        # ~1.3-1.4 TB/s HBM: a couple of outstanding descriptors is enough.
        k = 4
    else:
        # v7x (~3.2 TB/s HBM) and unknown/newer chips: widest fan-out.
        k = 8
    # Keep chunks reasonably large; never more descriptors than useful.
    return max(1, min(k, nbytes // _CHUNK_TARGET_BYTES))


# -------------------------------- kernels ---------------------------------- #

def _quantiles_copy_kernel(x_hbm, o_hbm, sem):
    """Single whole-tensor HBM->HBM DMA; no VMEM staging, no grid iterations."""
    cp = pltpu.make_async_copy(x_hbm, o_hbm, sem)
    # If this copy ever runs concurrently with latency-critical kernels,
    # cp.start(priority=1) would background it; default priority otherwise.
    cp.start()
    cp.wait()


def _make_chunked_copy_kernel(num_chunks: int):
    """HBM->HBM copy with `num_chunks` concurrently outstanding DMAs."""

    def kernel(x_hbm, o_hbm, sems):
        # Start all DMAs first so every descriptor is in flight ...
        for k in range(num_chunks):
            pltpu.make_async_copy(x_hbm.at[k], o_hbm.at[k], sems.at[k]).start()
        # ... then wait for all of them.  The TensorCore only pays the
        # (negligible) scalar cost of issuing the descriptors.
        for k in range(num_chunks):
            pltpu.make_async_copy(x_hbm.at[k], o_hbm.at[k], sems.at[k]).wait()

    return kernel


def _quantiles_alias_kernel(x_hbm, o_hbm):
    """No-op body: output is aliased to the input (input_output_aliases={0:0}),
    so the data is already in place and no DMA is issued at all."""
    del x_hbm, o_hbm


# -------------------------------- wrapper ----------------------------------- #

def quantiles_forward(
    x: jax.Array,
    tau: jax.Array,
    *,
    materialize: bool = False,
    donate: bool = False,
    num_chunks: int | None = None,
    force_pallas: bool = False,
):
    """JAX/Pallas equivalent of Quantiles.forward.

    Args:
        x:   predictions, e.g. NCHW layout (N, C, H, W) with C == len(tau).
             Any shape/dtype is supported.
        tau: 1-D float32 vector of quantile fractions (module metadata).
        materialize: if False (default), return `x` directly — the forward is
             an identity, so no data movement is required.  If True, produce a
             fresh output buffer.
        donate: if True (with materialize=True), the output buffer aliases the
             input via input_output_aliases={0: 0}; zero HBM traffic.  The
             caller must treat `x` as donated (do not read it afterwards when
             used under jit with donate_argnums).
        num_chunks: override the number of concurrently outstanding DMA
             descriptors used for the materialized copy.
        force_pallas: force the Pallas DMA path even for small tensors
             (used for testing; normally small tensors take an XLA copy).

    Returns:
        (y, tau): the analogue of QuantileTensor(x, tau=tau).
    """
    # TODO(synk): QuantileTensor is a metadata-carrying tensor subclass; we
    # represent it as a plain (data, tau) tuple since Pallas/JAX has no
    # tensor-subclass concept.  stats.StatsTracker bookkeeping is training-time
    # side state and not part of forward.
    if not materialize:
        # Hot path: identity — no kernel, no HBM traffic.
        return x, tau

    if donate:
        # Output buffer IS the (donated) input buffer: zero bytes moved.
        y = pl.pallas_call(
            _quantiles_alias_kernel,
            out_shape=jax.ShapeDtypeStruct(x.shape, x.dtype),
            in_specs=[pl.BlockSpec(memory_space=pl.ANY)],
            out_specs=pl.BlockSpec(memory_space=pl.ANY),
            input_output_aliases={0: 0},
            cost_estimate=pl.CostEstimate(
                flops=0, transcendentals=0, bytes_accessed=0
            ),
        )(x)
        return y, tau

    nbytes = x.size * jnp.dtype(x.dtype).itemsize

    # Tiny tensors: the custom-call launch and DMA-sem setup dominate, and the
    # Pallas boundary blocks XLA fusion.  Let XLA handle (or elide) the copy.
    if nbytes < _PALLAS_MIN_BYTES and not force_pallas:
        return jnp.copy(x), tau

    # Pick the DMA fan-out, then reduce it to a divisor of the element count.
    k = int(num_chunks) if num_chunks is not None else _target_num_chunks(nbytes)
    k = max(1, k)
    while k > 1 and x.size % k != 0:
        k -= 1

    cost = pl.CostEstimate(flops=0, transcendentals=0, bytes_accessed=2 * nbytes)

    if k == 1:
        # Single whole-tensor DMA on the original shape.
        y = pl.pallas_call(
            _quantiles_copy_kernel,
            out_shape=jax.ShapeDtypeStruct(x.shape, x.dtype),
            in_specs=[pl.BlockSpec(memory_space=pl.ANY)],
            out_specs=pl.BlockSpec(memory_space=pl.ANY),
            scratch_shapes=[pltpu.SemaphoreType.DMA(())],
            cost_estimate=cost,
        )(x)
        return y, tau

    # Chunked copy: wrapper-side flatten to (k, chunk) is a free metadata
    # reshape for contiguous row-major arrays; keep it outside the kernel.
    x2 = x.reshape(k, x.size // k)
    y2 = pl.pallas_call(
        _make_chunked_copy_kernel(k),
        out_shape=jax.ShapeDtypeStruct(x2.shape, x2.dtype),
        in_specs=[pl.BlockSpec(memory_space=pl.ANY)],
        out_specs=pl.BlockSpec(memory_space=pl.ANY),
        scratch_shapes=[pltpu.SemaphoreType.DMA((k,))],
        cost_estimate=cost,
    )(x2)
    return y2.reshape(x.shape), tau


# --------------------------------- test ------------------------------------- #

if __name__ == "__main__":
    key = jax.random.PRNGKey(0)

    # Deterministic "parameters": the quantile fractions tau (the module's
    # __init__ stores tau as a float32 tensor).  4 quantiles -> channel dim 4.
    n_quantiles = 4
    tau = jnp.asarray(
        [(i + 0.5) / n_quantiles for i in range(n_quantiles)], dtype=jnp.float32
    )

    # Example input consistent with a conv-head output: NCHW = (2, 4, 16, 16).
    x = jax.random.normal(key, (2, n_quantiles, 16, 16), dtype=jnp.float32)

    # 1) Default zero-copy path: identity, no kernel launched.
    y0, tau0 = quantiles_forward(x, tau)
    assert bool(jnp.all(y0 == x)) and bool(jnp.all(tau0 == tau))

    # 2) materialize=True on a small tensor: XLA copy bypass (no Pallas call).
    y1, _ = quantiles_forward(x, tau, materialize=True)
    y1 = jax.block_until_ready(y1)
    assert y1.shape == x.shape and y1.dtype == x.dtype
    assert bool(jnp.all(y1 == x))

    # 3) Pallas single-DMA copy kernel (force past the small-tensor bypass).
    y2, tau2 = quantiles_forward(x, tau, materialize=True, force_pallas=True)
    y2 = jax.block_until_ready(y2)
    assert y2.shape == x.shape and y2.dtype == x.dtype
    assert bool(jnp.all(y2 == x)) and bool(jnp.all(tau2 == tau))

    # 4) Pallas chunked-DMA copy kernel (4 concurrently outstanding DMAs).
    y3, _ = quantiles_forward(
        x, tau, materialize=True, force_pallas=True, num_chunks=4
    )
    y3 = jax.block_until_ready(y3)
    assert bool(jnp.all(y3 == x))

    # 5) Donated / aliased path under jit donation: output buffer aliases the
    #    (donated) input buffer; the kernel issues no DMA at all.
    donate_fn = jax.jit(
        lambda a: quantiles_forward(a, tau, materialize=True, donate=True)[0],
        donate_argnums=0,
    )
    x_donor = jnp.array(x)  # a separate buffer we are allowed to give up
    y4 = jax.block_until_ready(donate_fn(x_donor))
    # x_donor is donated — only compare against the surviving original.
    assert bool(jnp.all(y4 == x))

    print("KERNEL_OK")
</pallas_src>

<mosaic_0001>
module attributes {stable_mosaic.version = 11 : i64} {
  func.func @_quantiles_copy_kernel(%arg0: memref<2x4x16x16xf32, #tpu.memory_space<any>>, %arg1: memref<2x4x16x16xf32, #tpu.memory_space<any>>, %arg2: memref<!tpu.dma_semaphore, #tpu.memory_space<semaphore_mem>>) attributes {dimension_semantics = [], scalar_prefetch = 0 : i64, scratch_operands = 1 : i64, tpu.core_type = #tpu.core_type<tc>} {
    tpu.enqueue_dma source(%arg0 : memref<2x4x16x16xf32, #tpu.memory_space<any>>) target(%arg1 : memref<2x4x16x16xf32, #tpu.memory_space<any>>) target_semaphore(%arg2 : memref<!tpu.dma_semaphore, #tpu.memory_space<semaphore_mem>>)
    tpu.wait_dma2 semaphore(%arg2 : memref<!tpu.dma_semaphore, #tpu.memory_space<semaphore_mem>>) src(%arg0 : memref<2x4x16x16xf32, #tpu.memory_space<any>>) dst(%arg1 : memref<2x4x16x16xf32, #tpu.memory_space<any>>)
    return
  }
}

</mosaic_0001>

<llo_original>
// kernel: tpu_custom_call.1
$region0: #{tpu_custom_call.1}
  #allocation0 [shape = 'u32[]', space=smem, size = 0x4, offset = 0x4, fixed_abs, tag = 'smem constant byte address 0x4 - core index']
  #allocation1 [shape = 'u32[144,128]{1,0:T(1,128)}', space=vmem, size = 0x12000, scoped, tag = 'internal scratch']
  #allocation2 [shape = 's32[1]{0}', space=sflag, size = 0x4, scoped, tag = 'scratch operand']
  #allocation3 [shape = 's32[]', space=sflag, size = 0x4, offset = 0, fixed_abs, tag = 'sflag constant byte address 0x0 - dummy sync flag']
  #allocation4 [shape = 'u32[0]{0}', space=smem, size = 0, offset = 0, fixed_abs, tag = 'smem constant byte address 0x0 - null']
  %s0 = inlined_call_operand.hbm [shape: f32[2,4,16,16], index: 0, kind: input, shape index: {}]
  %s1 = inlined_call_operand.hbm [shape: f32[2,4,16,16], index: 1, kind: output, shape index: {}]
  %s2 = sld [smem:[#allocation0]]
  $region2: #{tpu_custom_call.1} parent=0
    _
  %s4 = ssub.s32 1, %s2
  %s5 = scalar_select 0, %s4, %s2
  %s7 = sshll.u32 1, 14
  %s8 = sxor.u32 4294967295, %s7
  %12 = dma.general %s0, 2048, %s1, [#allocation2], 131072, [#allocation4], 0, 0
  %s13 = smul.u32 2, 4
  %s14 = smul.u32 %s13, 16
  %s15 = smul.u32 %s14, 1
  %s16 = sshll.u32 %s15, 4
  %17 = dma.done [#allocation2], %s16
  %18 = vsyncmov [#allocation2]
  %s19 = vpop.sfrf %18
  %p20 = scmp.eq.s32.totalorder %s19, 0
  %p21 = pneg %p20
  %23 = shalt.err (%p21)

</llo_original>
